<compile_context>
chip_gen: v5e
topology: v5e:2x2
jax: 0.10.0
libtpu: 0.0.40
codegen_flags: <defaults>
</compile_context>

<pallas_src>
import random

import jax
import jax.numpy as jnp
import numpy as np
from jax.experimental import pallas as pl
from jax.experimental.pallas import tpu as pltpu

# ---- "config" / "num_sequence" constants (synthetic, deterministic) ----
BATCH_SIZE = 2
MAX_LEN = 8
EMBEDDING_DIM = 32
HIDDEN_SIZE = 32
VOCAB_SIZE = 14          # digits 0-9 + PAD/UNK/SOS/EOS
PAD = 0
SOS = 2
DROPOUT = 0.0            # single-layer GRU: PyTorch ignores dropout -> no-op

B_PAD = 8                # pad batch to one full sublane group
V_PAD = 128              # pad vocab to one full lane group (lane-dense stores)
NEG_INF = -1e30


def _fused_decoder_kernel(tf_ref,                     # SMEM [MAX_LEN] int32 (scalar prefetch)
                          gi_ref,                     # VMEM [3, V_PAD, H]  emb@W_ih^T + biases (gate-split)
                          whh_ref,                    # VMEM [3, H, H]      W_hh^T per gate
                          bhn_ref,                    # VMEM [1, H]         b_hh (n gate only)
                          wfc_ref, bfc_ref,           # VMEM [H, V_PAD], [1, V_PAD] (pad bias = -1e30)
                          enc_ref,                    # VMEM [B_PAD, H]     encoder hidden
                          tgt_oh_ref,                 # VMEM [1, B_PAD, V_PAD] teacher one-hot for step t
                          logp_ref,                   # out  [1, B_PAD, V_PAD]
                          hout_ref,                   # out  [B_PAD, H] (also the carried hidden state)
                          tok_ref):                   # scratch VMEM [B_PAD, V_PAD] one-hot of current token
    t = pl.program_id(0)
    lane = jax.lax.broadcasted_iota(jnp.int32, (B_PAD, V_PAD), 1)

    @pl.when(t == 0)
    def _init():
        tok_ref[...] = (lane == SOS).astype(jnp.float32)   # SOS start token
        hout_ref[...] = enc_ref[...]                        # decoder_hidden = encoder_hidden

    onehot = tok_ref[...]                                   # [B_PAD, V_PAD]
    h = hout_ref[...]                                       # [B_PAD, H]

    # input projections via one-hot gather against the precomputed table
    gi_r = jnp.dot(onehot, gi_ref[0], preferred_element_type=jnp.float32)   # [B_PAD, H]
    gi_z = jnp.dot(onehot, gi_ref[1], preferred_element_type=jnp.float32)
    gi_n = jnp.dot(onehot, gi_ref[2], preferred_element_type=jnp.float32)

    # hidden projections (gate-split, lane-aligned)
    gh_r = jnp.dot(h, whh_ref[0], preferred_element_type=jnp.float32)
    gh_z = jnp.dot(h, whh_ref[1], preferred_element_type=jnp.float32)
    gh_n = jnp.dot(h, whh_ref[2], preferred_element_type=jnp.float32) + bhn_ref[...]

    # GRU cell (PyTorch r|z|n ordering; r/z biases already folded into gi table)
    r = jax.nn.sigmoid(gi_r + gh_r)
    z = jax.nn.sigmoid(gi_z + gh_z)
    n = jnp.tanh(gi_n + r * gh_n)
    h_new = (1.0 - z) * n + z * h                            # [B_PAD, H]

    # fc projection into a lane-dense 128-wide slab (pad lanes get -1e30 bias)
    logits = jnp.dot(h_new, wfc_ref[...], preferred_element_type=jnp.float32) + bfc_ref[...]

    # stable log_softmax (pad lanes contribute exp(..)=0)
    m = jnp.max(logits, axis=-1, keepdims=True)
    shifted = logits - m
    lse = jnp.log(jnp.sum(jnp.exp(shifted), axis=-1, keepdims=True))
    logp_ref[0, :, :] = shifted - lse

    hout_ref[...] = h_new

    # next-token selection (greedy first-argmax vs teacher forcing), all vector ops
    cand = jnp.where(logits == m, lane, V_PAD)
    amin = jnp.min(cand, axis=-1, keepdims=True)             # first index achieving the max
    greedy = (lane == amin).astype(jnp.float32)
    tf = (tf_ref[t] > 0).astype(jnp.float32)                 # scalar coin flip from SMEM
    tok_ref[...] = tf * tgt_oh_ref[0, :, :] + (1.0 - tf) * greedy


def _fused_decode(tf_mask, gi, whh, bhn, wfc, bfc, enc, tgt_oh):
    const2 = lambda t, tf: (0, 0)
    const3 = lambda t, tf: (0, 0, 0)
    step3 = lambda t, tf: (t, 0, 0)
    grid_spec = pltpu.PrefetchScalarGridSpec(
        num_scalar_prefetch=1,
        grid=(MAX_LEN,),
        in_specs=[
            pl.BlockSpec((3, V_PAD, HIDDEN_SIZE), const3),        # gi table (resident)
            pl.BlockSpec((3, HIDDEN_SIZE, HIDDEN_SIZE), const3),  # W_hh^T per gate (resident)
            pl.BlockSpec((1, HIDDEN_SIZE), const2),               # b_hh n-gate
            pl.BlockSpec((HIDDEN_SIZE, V_PAD), const2),           # W_fc^T padded
            pl.BlockSpec((1, V_PAD), const2),                     # b_fc padded (-1e30)
            pl.BlockSpec((B_PAD, HIDDEN_SIZE), const2),           # encoder hidden
            pl.BlockSpec((1, B_PAD, V_PAD), step3),               # teacher one-hot for step t
        ],
        out_specs=(
            pl.BlockSpec((1, B_PAD, V_PAD), step3),               # log-probs, lane-dense
            pl.BlockSpec((B_PAD, HIDDEN_SIZE), const2),           # final hidden (carried)
        ),
        scratch_shapes=[pltpu.VMEM((B_PAD, V_PAD), jnp.float32)], # current-token one-hot
    )
    return pl.pallas_call(
        _fused_decoder_kernel,
        out_shape=(
            jax.ShapeDtypeStruct((MAX_LEN, B_PAD, V_PAD), jnp.float32),
            jax.ShapeDtypeStruct((B_PAD, HIDDEN_SIZE), jnp.float32),
        ),
        grid_spec=grid_spec,
        compiler_params=pltpu.CompilerParams(
            dimension_semantics=("arbitrary",)),                  # time axis is sequential
    )(tf_mask, gi, whh, bhn, wfc, bfc, enc, tgt_oh)


@jax.jit
def _decode_jit(params, encoder_hidden, target, tf_mask):
    H, E, V, B = HIDDEN_SIZE, EMBEDDING_DIM, VOCAB_SIZE, BATCH_SIZE
    emb = params["emb"]                                  # [V, E]
    w_ih = params["w_ih"].reshape(3, H, E)               # PyTorch layout [3H, E] -> gate-split
    w_hh = params["w_hh"].reshape(3, H, H)
    b_ih = params["b_ih"].reshape(3, H)
    b_hh = params["b_hh"].reshape(3, H)
    w_fc = params["w_fc"]                                # [V, H]
    b_fc = params["b_fc"]                                # [V]

    # Precompute Gi[g, v] = emb[v] @ W_ih[g]^T + b_ih[g]; fold b_hh into r, z rows.
    gi = jnp.einsum("ve,ghe->gvh", emb, w_ih) + b_ih[:, None, :]          # [3, V, H]
    gi = gi.at[0].add(b_hh[0]).at[1].add(b_hh[1])
    gi_pad = jnp.zeros((3, V_PAD, H), jnp.float32).at[:, :V, :].set(gi)

    whh = jnp.transpose(w_hh, (0, 2, 1))                                   # h @ whh[g]
    bhn = b_hh[2][None, :]                                                 # [1, H]

    wfc = jnp.zeros((H, V_PAD), jnp.float32).at[:, :V].set(w_fc.T)
    bfc = jnp.full((1, V_PAD), NEG_INF, jnp.float32).at[0, :V].set(b_fc)

    enc = jnp.zeros((B_PAD, H), jnp.float32).at[:B].set(encoder_hidden[0])

    lane = jnp.arange(V_PAD, dtype=jnp.int32)
    t_oh = (target.T[:, :, None] == lane[None, None, :]).astype(jnp.float32)   # [MAX_LEN, B, V_PAD]
    tgt_oh = jnp.zeros((MAX_LEN, B_PAD, V_PAD), jnp.float32).at[:, :B, :].set(t_oh)

    logp_pad, h_out = _fused_decode(tf_mask, gi_pad, whh, bhn, wfc, bfc, enc, tgt_oh)

    decoder_outputs = jnp.transpose(logp_pad, (1, 0, 2))[:B, :, :V]        # [B, max_len, V]
    decoder_hidden = h_out[:B][None]                                       # [1, B, H]
    return decoder_outputs, decoder_hidden


def init_params(key):
    """Parameters in PyTorch layouts (gate order r|z|n)."""
    ks = jax.random.split(key, 7)
    s = 0.1
    emb = s * jax.random.normal(ks[0], (VOCAB_SIZE, EMBEDDING_DIM), jnp.float32)
    emb = emb.at[PAD].set(0.0)                                             # padding_idx
    w_ih = s * jax.random.normal(ks[1], (3 * HIDDEN_SIZE, EMBEDDING_DIM), jnp.float32)
    w_hh = s * jax.random.normal(ks[2], (3 * HIDDEN_SIZE, HIDDEN_SIZE), jnp.float32)
    b_ih = s * jax.random.normal(ks[3], (3 * HIDDEN_SIZE,), jnp.float32)
    b_hh = s * jax.random.normal(ks[4], (3 * HIDDEN_SIZE,), jnp.float32)
    w_fc = s * jax.random.normal(ks[5], (VOCAB_SIZE, HIDDEN_SIZE), jnp.float32)
    b_fc = s * jax.random.normal(ks[6], (VOCAB_SIZE,), jnp.float32)
    return dict(emb=emb, w_ih=w_ih, w_hh=w_hh, b_ih=b_ih, b_hh=b_hh,
                w_fc=w_fc, b_fc=b_fc)


def num_decoder_forward(params, encoder_hidden, target, target_length=None, tf_flags=None):
    """Mirrors NumDecoder.forward.  encoder_hidden [1,B,H], target [B,max_len]."""
    del target_length                                    # unused in the PyTorch forward too
    if tf_flags is None:
        # per-call host randomness, mirroring `random.random() > 0.5` in PyTorch;
        # passed as data so jit does not freeze the coin flips.
        tf_flags = [random.random() > 0.5 for _ in range(MAX_LEN)]
    tf_mask = jnp.asarray([1 if f else 0 for f in tf_flags], dtype=jnp.int32)
    return _decode_jit(params, encoder_hidden, target.astype(jnp.int32), tf_mask)


def num_decoder_reference(params, encoder_hidden, target, tf_flags):
    """Pure-JAX reference of the PyTorch module (same math, unfused)."""
    H = HIDDEN_SIZE
    emb, w_ih, w_hh = params["emb"], params["w_ih"], params["w_hh"]
    b_ih, b_hh, w_fc, b_fc = params["b_ih"], params["b_hh"], params["w_fc"], params["b_fc"]
    h = encoder_hidden[0]
    tok = jnp.full((BATCH_SIZE,), SOS, jnp.int32)
    outs = []
    for t in range(MAX_LEN):
        x = emb[tok]
        gi = x @ w_ih.T + b_ih
        gh = h @ w_hh.T + b_hh
        r = jax.nn.sigmoid(gi[:, :H] + gh[:, :H])
        z = jax.nn.sigmoid(gi[:, H:2 * H] + gh[:, H:2 * H])
        n = jnp.tanh(gi[:, 2 * H:] + r * gh[:, 2 * H:])
        h = (1.0 - z) * n + z * h
        logp = jax.nn.log_softmax(h @ w_fc.T + b_fc, axis=-1)
        outs.append(logp)
        if tf_flags[t]:
            tok = target[:, t].astype(jnp.int32)
        else:
            tok = jnp.argmax(logp, axis=-1).astype(jnp.int32)
    return jnp.stack(outs, axis=1), h[None]


if __name__ == "__main__":
    random.seed(0)
    key = jax.random.PRNGKey(0)
    k_params, k_hid, k_tgt = jax.random.split(key, 3)

    params = init_params(k_params)
    encoder_hidden = jax.random.normal(k_hid, (1, BATCH_SIZE, HIDDEN_SIZE), jnp.float32)
    target = jax.random.randint(k_tgt, (BATCH_SIZE, MAX_LEN), 0, VOCAB_SIZE, jnp.int32)

    tf_flags = [random.random() > 0.5 for _ in range(MAX_LEN)]

    dec_out, dec_hid = num_decoder_forward(params, encoder_hidden, target, tf_flags=tf_flags)
    jax.block_until_ready((dec_out, dec_hid))

    assert dec_out.shape == (BATCH_SIZE, MAX_LEN, VOCAB_SIZE)
    assert dec_hid.shape == (1, BATCH_SIZE, HIDDEN_SIZE)
    assert bool(jnp.all(jnp.isfinite(dec_out)))
    np.testing.assert_allclose(np.asarray(jnp.exp(dec_out).sum(-1)), 1.0, atol=1e-4)

    # compare against the unfused pure-JAX reference (same coin flips)
    ref_out, ref_hid = num_decoder_reference(params, encoder_hidden, target, tf_flags)
    np.testing.assert_allclose(np.asarray(dec_out), np.asarray(ref_out), atol=5e-4, rtol=5e-4)
    np.testing.assert_allclose(np.asarray(dec_hid), np.asarray(ref_hid), atol=5e-4, rtol=5e-4)

    print("KERNEL_OK")
</pallas_src>

<mosaic_0001>
module attributes {stable_mosaic.version = 11 : i64} {
  func.func @_fused_decoder_kernel(%arg0: i32, %arg1: memref<8xi32, #tpu.memory_space<smem>>, %arg2: memref<3x128x32xf32, #tpu.memory_space<vmem>>, %arg3: memref<3x32x32xf32, #tpu.memory_space<vmem>>, %arg4: memref<1x32xf32, #tpu.memory_space<vmem>>, %arg5: memref<32x128xf32, #tpu.memory_space<vmem>>, %arg6: memref<1x128xf32, #tpu.memory_space<vmem>>, %arg7: memref<8x32xf32, #tpu.memory_space<vmem>>, %arg8: memref<1x8x128xf32, #tpu.memory_space<vmem>>, %arg9: memref<1x8x128xf32, #tpu.memory_space<vmem>>, %arg10: memref<8x32xf32, #tpu.memory_space<vmem>>, %arg11: memref<8x128xf32, #tpu.memory_space<vmem>>) attributes {dimension_semantics = [#tpu.dimension_semantics<arbitrary>], iteration_bounds = array<i64: 8>, scalar_prefetch = 1 : i64, scratch_operands = 1 : i64, tpu.core_type = #tpu.core_type<tc>, window_params = [{pipeline_mode = #tpu.pipeline_mode<synchronous>, transform_indices = @transform_0, window_bounds = array<i64: 3, 128, 32>}, {pipeline_mode = #tpu.pipeline_mode<synchronous>, transform_indices = @transform_1, window_bounds = array<i64: 3, 32, 32>}, {pipeline_mode = #tpu.pipeline_mode<synchronous>, transform_indices = @transform_2, window_bounds = array<i64: 1, 32>}, {pipeline_mode = #tpu.pipeline_mode<synchronous>, transform_indices = @transform_3, window_bounds = array<i64: 32, 128>}, {pipeline_mode = #tpu.pipeline_mode<synchronous>, transform_indices = @transform_4, window_bounds = array<i64: 1, 128>}, {pipeline_mode = #tpu.pipeline_mode<synchronous>, transform_indices = @transform_5, window_bounds = array<i64: 8, 32>}, {transform_indices = @transform_6, window_bounds = array<i64: 1, 8, 128>}, {transform_indices = @transform_7, window_bounds = array<i64: 1, 8, 128>}, {pipeline_mode = #tpu.pipeline_mode<synchronous>, transform_indices = @transform_8, window_bounds = array<i64: 8, 32>}]} {
    %0 = tpu.iota {dimensions = array<i32: 1>} : vector<8x128xi32>
    %c0_i32 = arith.constant 0 : i32
    %1 = arith.cmpi eq, %arg0, %c0_i32 : i32
    %2 = arith.extui %1 : i1 to i32
    %c0_i32_0 = arith.constant 0 : i32
    %3 = arith.cmpi ne, %2, %c0_i32_0 : i32
    scf.if %3 {
      %c2_i32 = arith.constant 2 : i32
      %90 = vector.broadcast %c2_i32 : i32 to vector<8x128xi32>
      %91 = arith.cmpi eq, %0, %90 : vector<8x128xi32>
      %92 = arith.extui %91 : vector<8x128xi1> to vector<8x128xi32>
      %93 = arith.sitofp %92 : vector<8x128xi32> to vector<8x128xf32>
      %c0_50 = arith.constant 0 : index
      %c0_51 = arith.constant 0 : index
      %94 = vector.load %arg11[%c0_50, %c0_51] : memref<8x128xf32, #tpu.memory_space<vmem>>, vector<8x128xf32>
      tpu.vector_store %arg11[%c0_50, %c0_51], %93 {strides = array<i32>} : memref<8x128xf32, #tpu.memory_space<vmem>>, vector<8x128xf32>,
      %c0_52 = arith.constant 0 : index
      %c0_53 = arith.constant 0 : index
      %95 = vector.load %arg7[%c0_52, %c0_53] : memref<8x32xf32, #tpu.memory_space<vmem>>, vector<8x32xf32>
      %c0_54 = arith.constant 0 : index
      %c0_55 = arith.constant 0 : index
      %96 = vector.load %arg10[%c0_54, %c0_55] : memref<8x32xf32, #tpu.memory_space<vmem>>, vector<8x32xf32>
      tpu.vector_store %arg10[%c0_54, %c0_55], %95 {strides = array<i32>} : memref<8x32xf32, #tpu.memory_space<vmem>>, vector<8x32xf32>,
    } else {
    }
    %c0 = arith.constant 0 : index
    %c0_1 = arith.constant 0 : index
    %4 = vector.load %arg11[%c0, %c0_1] : memref<8x128xf32, #tpu.memory_space<vmem>>, vector<8x128xf32>
    %c0_2 = arith.constant 0 : index
    %c0_3 = arith.constant 0 : index
    %5 = vector.load %arg10[%c0_2, %c0_3] : memref<8x32xf32, #tpu.memory_space<vmem>>, vector<8x32xf32>
    %c0_4 = arith.constant 0 : index
    %c0_5 = arith.constant 0 : index
    %c0_6 = arith.constant 0 : index
    %6 = vector.load %arg2[%c0_4, %c0_5, %c0_6] : memref<3x128x32xf32, #tpu.memory_space<vmem>>, vector<1x128x32xf32>
    %7 = vector.shape_cast %6 : vector<1x128x32xf32> to vector<128x32xf32>
    %cst = arith.constant dense<0.000000e+00> : vector<8x32xf32>
    %8 = tpu.matmul %4, %7, %cst {dimension_numbers = #tpu.dot_dimension_numbers<[1], [0], [0], [1], [0, 0, 1, 1], [], []>} : vector<8x128xf32>, vector<128x32xf32>, vector<8x32xf32> -> vector<8x32xf32>
    %c1 = arith.constant 1 : index
    %c0_7 = arith.constant 0 : index
    %c0_8 = arith.constant 0 : index
    %9 = vector.load %arg2[%c1, %c0_7, %c0_8] : memref<3x128x32xf32, #tpu.memory_space<vmem>>, vector<1x128x32xf32>
    %10 = vector.shape_cast %9 : vector<1x128x32xf32> to vector<128x32xf32>
    %cst_9 = arith.constant dense<0.000000e+00> : vector<8x32xf32>
    %11 = tpu.matmul %4, %10, %cst_9 {dimension_numbers = #tpu.dot_dimension_numbers<[1], [0], [0], [1], [0, 0, 1, 1], [], []>} : vector<8x128xf32>, vector<128x32xf32>, vector<8x32xf32> -> vector<8x32xf32>
    %c2 = arith.constant 2 : index
    %c0_10 = arith.constant 0 : index
    %c0_11 = arith.constant 0 : index
    %12 = vector.load %arg2[%c2, %c0_10, %c0_11] : memref<3x128x32xf32, #tpu.memory_space<vmem>>, vector<1x128x32xf32>
    %13 = vector.shape_cast %12 : vector<1x128x32xf32> to vector<128x32xf32>
    %cst_12 = arith.constant dense<0.000000e+00> : vector<8x32xf32>
    %14 = tpu.matmul %4, %13, %cst_12 {dimension_numbers = #tpu.dot_dimension_numbers<[1], [0], [0], [1], [0, 0, 1, 1], [], []>} : vector<8x128xf32>, vector<128x32xf32>, vector<8x32xf32> -> vector<8x32xf32>
    %c0_13 = arith.constant 0 : index
    %c0_14 = arith.constant 0 : index
    %c0_15 = arith.constant 0 : index
    %15 = vector.load %arg3[%c0_13, %c0_14, %c0_15] : memref<3x32x32xf32, #tpu.memory_space<vmem>>, vector<1x32x32xf32>
    %16 = vector.shape_cast %15 : vector<1x32x32xf32> to vector<32x32xf32>
    %cst_16 = arith.constant dense<0.000000e+00> : vector<8x32xf32>
    %17 = tpu.matmul %5, %16, %cst_16 {dimension_numbers = #tpu.dot_dimension_numbers<[1], [0], [0], [1], [0, 0, 1, 1], [], []>} : vector<8x32xf32>, vector<32x32xf32>, vector<8x32xf32> -> vector<8x32xf32>
    %c1_17 = arith.constant 1 : index
    %c0_18 = arith.constant 0 : index
    %c0_19 = arith.constant 0 : index
    %18 = vector.load %arg3[%c1_17, %c0_18, %c0_19] : memref<3x32x32xf32, #tpu.memory_space<vmem>>, vector<1x32x32xf32>
    %19 = vector.shape_cast %18 : vector<1x32x32xf32> to vector<32x32xf32>
    %cst_20 = arith.constant dense<0.000000e+00> : vector<8x32xf32>
    %20 = tpu.matmul %5, %19, %cst_20 {dimension_numbers = #tpu.dot_dimension_numbers<[1], [0], [0], [1], [0, 0, 1, 1], [], []>} : vector<8x32xf32>, vector<32x32xf32>, vector<8x32xf32> -> vector<8x32xf32>
    %c2_21 = arith.constant 2 : index
    %c0_22 = arith.constant 0 : index
    %c0_23 = arith.constant 0 : index
    %21 = vector.load %arg3[%c2_21, %c0_22, %c0_23] : memref<3x32x32xf32, #tpu.memory_space<vmem>>, vector<1x32x32xf32>
    %22 = vector.shape_cast %21 : vector<1x32x32xf32> to vector<32x32xf32>
    %cst_24 = arith.constant dense<0.000000e+00> : vector<8x32xf32>
    %23 = tpu.matmul %5, %22, %cst_24 {dimension_numbers = #tpu.dot_dimension_numbers<[1], [0], [0], [1], [0, 0, 1, 1], [], []>} : vector<8x32xf32>, vector<32x32xf32>, vector<8x32xf32> -> vector<8x32xf32>
    %c0_25 = arith.constant 0 : index
    %c0_26 = arith.constant 0 : index
    %24 = vector.load %arg4[%c0_25, %c0_26] : memref<1x32xf32, #tpu.memory_space<vmem>>, vector<1x32xf32>
    %25 = vector.broadcast %24 : vector<1x32xf32> to vector<8x32xf32>
    %26 = arith.addf %23, %25 : vector<8x32xf32>
    %27 = arith.addf %8, %17 : vector<8x32xf32>
    %28 = arith.negf %27 : vector<8x32xf32>
    %29 = math.exp %28 : vector<8x32xf32>
    %cst_27 = arith.constant 1.000000e+00 : f32
    %30 = vector.broadcast %cst_27 : f32 to vector<8x32xf32>
    %31 = arith.addf %30, %29 : vector<8x32xf32>
    %32 = arith.divf %30, %31 : vector<8x32xf32>
    %33 = arith.addf %11, %20 : vector<8x32xf32>
    %34 = arith.negf %33 : vector<8x32xf32>
    %35 = math.exp %34 : vector<8x32xf32>
    %cst_28 = arith.constant 1.000000e+00 : f32
    %36 = vector.broadcast %cst_28 : f32 to vector<8x32xf32>
    %37 = arith.addf %36, %35 : vector<8x32xf32>
    %38 = arith.divf %36, %37 : vector<8x32xf32>
    %39 = arith.mulf %32, %26 : vector<8x32xf32>
    %40 = arith.addf %14, %39 : vector<8x32xf32>
    %41 = math.tanh %40 : vector<8x32xf32>
    %cst_29 = arith.constant 1.000000e+00 : f32
    %42 = vector.broadcast %cst_29 : f32 to vector<8x32xf32>
    %43 = arith.subf %42, %38 : vector<8x32xf32>
    %44 = arith.mulf %43, %41 : vector<8x32xf32>
    %45 = arith.mulf %38, %5 : vector<8x32xf32>
    %46 = arith.addf %44, %45 : vector<8x32xf32>
    %c0_30 = arith.constant 0 : index
    %c0_31 = arith.constant 0 : index
    %47 = vector.load %arg5[%c0_30, %c0_31] : memref<32x128xf32, #tpu.memory_space<vmem>>, vector<32x128xf32>
    %cst_32 = arith.constant dense<0.000000e+00> : vector<8x128xf32>
    %48 = tpu.matmul %46, %47, %cst_32 {dimension_numbers = #tpu.dot_dimension_numbers<[1], [0], [0], [1], [0, 0, 1, 1], [], []>} : vector<8x32xf32>, vector<32x128xf32>, vector<8x128xf32> -> vector<8x128xf32>
    %c0_33 = arith.constant 0 : index
    %c0_34 = arith.constant 0 : index
    %49 = vector.load %arg6[%c0_33, %c0_34] : memref<1x128xf32, #tpu.memory_space<vmem>>, vector<1x128xf32>
    %50 = vector.broadcast %49 : vector<1x128xf32> to vector<8x128xf32>
    %51 = arith.addf %48, %50 : vector<8x128xf32>
    %cst_35 = arith.constant dense<0xFF800000> : vector<8xf32>
    %52 = vector.multi_reduction <maximumf>, %51, %cst_35 [1] : vector<8x128xf32> to vector<8xf32>
    %53 = vector.shape_cast %52 : vector<8xf32> to vector<8x1xf32>
    %54 = vector.broadcast %53 : vector<8x1xf32> to vector<8x128xf32>
    %55 = arith.subf %51, %54 : vector<8x128xf32>
    %56 = math.exp %55 : vector<8x128xf32>
    %cst_36 = arith.constant dense<0.000000e+00> : vector<8xf32>
    %57 = vector.multi_reduction <add>, %56, %cst_36 [1] : vector<8x128xf32> to vector<8xf32>
    %58 = vector.shape_cast %57 : vector<8xf32> to vector<8x1xf32>
    %59 = math.log %58 : vector<8x1xf32>
    %60 = vector.broadcast %59 : vector<8x1xf32> to vector<8x128xf32>
    %61 = arith.subf %55, %60 : vector<8x128xf32>
    %c0_37 = arith.constant 0 : index
    %c0_38 = arith.constant 0 : index
    %c0_39 = arith.constant 0 : index
    %62 = vector.load %arg9[%c0_37, %c0_38, %c0_39] : memref<1x8x128xf32, #tpu.memory_space<vmem>>, vector<1x8x128xf32>
    %63 = vector.shape_cast %62 : vector<1x8x128xf32> to vector<8x128xf32>
    %64 = vector.shape_cast %61 : vector<8x128xf32> to vector<1x8x128xf32>
    tpu.vector_store %arg9[%c0_37, %c0_38, %c0_39], %64 {strides = array<i32>} : memref<1x8x128xf32, #tpu.memory_space<vmem>>, vector<1x8x128xf32>,
    %c0_40 = arith.constant 0 : index
    %c0_41 = arith.constant 0 : index
    %65 = vector.load %arg10[%c0_40, %c0_41] : memref<8x32xf32, #tpu.memory_space<vmem>>, vector<8x32xf32>
    tpu.vector_store %arg10[%c0_40, %c0_41], %46 {strides = array<i32>} : memref<8x32xf32, #tpu.memory_space<vmem>>, vector<8x32xf32>,
    %66 = vector.broadcast %53 : vector<8x1xf32> to vector<8x128xf32>
    %67 = arith.cmpf oeq, %51, %66 : vector<8x128xf32>
    %c128_i32 = arith.constant 128 : i32
    %68 = vector.broadcast %c128_i32 : i32 to vector<8x128xi32>
    %69 = arith.select %67, %0, %68 : vector<8x128xi1>, vector<8x128xi32>
    %cst_42 = arith.constant dense<2147483647> : vector<8xi32>
    %70 = vector.multi_reduction <minsi>, %69, %cst_42 [1] : vector<8x128xi32> to vector<8xi32>
    %71 = vector.shape_cast %70 : vector<8xi32> to vector<8x1xi32>
    %72 = vector.broadcast %71 : vector<8x1xi32> to vector<8x128xi32>
    %73 = arith.cmpi eq, %0, %72 : vector<8x128xi32>
    %74 = arith.extui %73 : vector<8x128xi1> to vector<8x128xi32>
    %75 = arith.sitofp %74 : vector<8x128xi32> to vector<8x128xf32>
    %76 = arith.index_cast %arg0 : i32 to index
    %77 = memref.load %arg1[%76] : memref<8xi32, #tpu.memory_space<smem>>
    %c0_i32_43 = arith.constant 0 : i32
    %78 = arith.cmpi sgt, %77, %c0_i32_43 : i32
    %79 = arith.extui %78 : i1 to i32
    %80 = arith.sitofp %79 : i32 to f32
    %c0_44 = arith.constant 0 : index
    %c0_45 = arith.constant 0 : index
    %c0_46 = arith.constant 0 : index
    %81 = vector.load %arg8[%c0_44, %c0_45, %c0_46] : memref<1x8x128xf32, #tpu.memory_space<vmem>>, vector<1x8x128xf32>
    %82 = vector.shape_cast %81 : vector<1x8x128xf32> to vector<8x128xf32>
    %83 = vector.broadcast %80 : f32 to vector<8x128xf32>
    %84 = arith.mulf %83, %82 : vector<8x128xf32>
    %cst_47 = arith.constant 1.000000e+00 : f32
    %85 = arith.subf %cst_47, %80 : f32
    %86 = vector.broadcast %85 : f32 to vector<8x128xf32>
    %87 = arith.mulf %86, %75 : vector<8x128xf32>
    %88 = arith.addf %84, %87 : vector<8x128xf32>
    %c0_48 = arith.constant 0 : index
    %c0_49 = arith.constant 0 : index
    %89 = vector.load %arg11[%c0_48, %c0_49] : memref<8x128xf32, #tpu.memory_space<vmem>>, vector<8x128xf32>
    tpu.vector_store %arg11[%c0_48, %c0_49], %88 {strides = array<i32>} : memref<8x128xf32, #tpu.memory_space<vmem>>, vector<8x128xf32>,
    return
  }
  func.func @transform_0(%arg0: i32, %arg1: memref<8xi32, #tpu.memory_space<smem>>) -> (i32, i32, i32) {
    %c0_i32 = arith.constant 0 : i32
    %c0_i32_0 = arith.constant 0 : i32
    %c0_i32_1 = arith.constant 0 : i32
    %c0_i32_2 = arith.constant 0 : i32
    return %c0_i32, %c0_i32_0, %c0_i32_1 : i32, i32, i32
  }
  func.func @transform_1(%arg0: i32, %arg1: memref<8xi32, #tpu.memory_space<smem>>) -> (i32, i32, i32) {
    %c0_i32 = arith.constant 0 : i32
    %c0_i32_0 = arith.constant 0 : i32
    %c0_i32_1 = arith.constant 0 : i32
    %c0_i32_2 = arith.constant 0 : i32
    return %c0_i32, %c0_i32_0, %c0_i32_1 : i32, i32, i32
  }
  func.func @transform_2(%arg0: i32, %arg1: memref<8xi32, #tpu.memory_space<smem>>) -> (i32, i32) {
    %c0_i32 = arith.constant 0 : i32
    %c0_i32_0 = arith.constant 0 : i32
    %c0_i32_1 = arith.constant 0 : i32
    return %c0_i32, %c0_i32_0 : i32, i32
  }
  func.func @transform_3(%arg0: i32, %arg1: memref<8xi32, #tpu.memory_space<smem>>) -> (i32, i32) {
    %c0_i32 = arith.constant 0 : i32
    %c0_i32_0 = arith.constant 0 : i32
    %c0_i32_1 = arith.constant 0 : i32
    return %c0_i32, %c0_i32_0 : i32, i32
  }
  func.func @transform_4(%arg0: i32, %arg1: memref<8xi32, #tpu.memory_space<smem>>) -> (i32, i32) {
    %c0_i32 = arith.constant 0 : i32
    %c0_i32_0 = arith.constant 0 : i32
    %c0_i32_1 = arith.constant 0 : i32
    return %c0_i32, %c0_i32_0 : i32, i32
  }
  func.func @transform_5(%arg0: i32, %arg1: memref<8xi32, #tpu.memory_space<smem>>) -> (i32, i32) {
    %c0_i32 = arith.constant 0 : i32
    %c0_i32_0 = arith.constant 0 : i32
    %c0_i32_1 = arith.constant 0 : i32
    return %c0_i32, %c0_i32_0 : i32, i32
  }
  func.func @transform_6(%arg0: i32, %arg1: memref<8xi32, #tpu.memory_space<smem>>) -> (i32, i32, i32) {
    %c0_i32 = arith.constant 0 : i32
    %c0_i32_0 = arith.constant 0 : i32
    %c0_i32_1 = arith.constant 0 : i32
    return %arg0, %c0_i32, %c0_i32_0 : i32, i32, i32
  }
  func.func @transform_7(%arg0: i32, %arg1: memref<8xi32, #tpu.memory_space<smem>>) -> (i32, i32, i32) {
    %c0_i32 = arith.constant 0 : i32
    %c0_i32_0 = arith.constant 0 : i32
    %c0_i32_1 = arith.constant 0 : i32
    return %arg0, %c0_i32, %c0_i32_0 : i32, i32, i32
  }
  func.func @transform_8(%arg0: i32, %arg1: memref<8xi32, #tpu.memory_space<smem>>) -> (i32, i32) {
    %c0_i32 = arith.constant 0 : i32
    %c0_i32_0 = arith.constant 0 : i32
    %c0_i32_1 = arith.constant 0 : i32
    return %c0_i32, %c0_i32_0 : i32, i32
  }
}

</mosaic_0001>

<llo_original>
// kernel: _decode_jit.1
$region0: #{_decode_jit.1}
  #allocation0 [shape = 'u32[]', space=smem, size = 0x4, offset = 0x4, fixed_abs, tag = 'smem constant byte address 0x4 - core index']
  #allocation1 [shape = 'u32[72,128]{1,0:T(1,128)}', space=vmem, size = 0x9000, scoped, tag = 'internal scratch']
  #allocation2 [shape = 'f32[8,128]{1,0:T(8,128)}', space=vmem, size = 0x1000, scoped, tag = 'scratch operand']
  #allocation3 [shape = 's32[1]{0}', space=sflag, size = 0x4, scoped, tag = 'scoped memory for _decode_jit.1']
  #allocation4 [shape = 'u8[512]{0}', space=smem, size = 0x200, scoped, tag = 'prefetched SMEM operand 0']
  %s0 = inlined_call_operand.vmem [shape: s32[8], index: 0, kind: input, shape index: {}]
  %s1 = inlined_call_operand.vmem [shape: f32[3,128,32], index: 1, kind: input, shape index: {}]
  %s2 = inlined_call_operand.vmem [shape: f32[3,32,32], index: 2, kind: input, shape index: {}]
  %s3 = inlined_call_operand.vmem [shape: f32[1,32], index: 3, kind: input, shape index: {}]
  %s4 = inlined_call_operand.vmem [shape: f32[32,128], index: 4, kind: input, shape index: {}]
  %s5 = inlined_call_operand.vmem [shape: f32[1,128], index: 5, kind: input, shape index: {}]
  %s6 = inlined_call_operand.vmem [shape: f32[8,32], index: 6, kind: input, shape index: {}]
  %s7 = inlined_call_operand.vmem [shape: f32[8,8,128], index: 7, kind: input, shape index: {}]
  %s8 = inlined_call_operand.vmem [shape: f32[8,8,128], index: 8, kind: output, shape index: {0}]
  %s9 = inlined_call_operand.vmem [shape: f32[8,32], index: 9, kind: output, shape index: {1}]
  %10 = xla_tuple %s8, %s9
  %s11 = sld [smem:[#allocation0]]
  $region73: #{_decode_jit.1} parent=0
    _
  %s13 = ssub.s32 1, %s11
  %s14 = scalar_select 0, %s13, %s11
  %s16 = sshll.u32 %s0, 4
  %s17 = int_to_ptr.vmem [resolvable:$true] %s16
  %19 = dma.vmem_to_smem %s17, 16, [#allocation4], [#allocation3]
  %21 = dma.done [#allocation3], 16
  %22 = sfence
  loop: start=0, step=1, limit=10
  $region2: #{_decode_jit.1} parent=0 // loop_pre_header
    _
  $region3: #{_decode_jit.1} parent=0 // loop_header
    %s24 = sphi 0, %s28
    %p25 = scmp.ge.s32.totalorder %s24, 10
    %s32 = sphi 0, %s32
    %s34 = sphi 0, %s32
    %s35 = sphi 0, %s34
    %s49 = sphi 0, %s35
    %s53 = sphi 0, %s53
    %s55 = sphi 0, %s53
    %s56 = sphi 0, %s55
    %s70 = sphi 0, %s56
    %s74 = sphi 0, %s74
    %s76 = sphi 0, %s74
    %s77 = sphi 0, %s76
    %s91 = sphi 0, %s77
    %s95 = sphi 0, %s95
    %s97 = sphi 0, %s95
    %s98 = sphi 0, %s97
    %s112 = sphi 0, %s98
    %s116 = sphi 0, %s116
    %s118 = sphi 0, %s116
    %s119 = sphi 0, %s118
    %s133 = sphi 0, %s119
    %s137 = sphi 0, %s137
    %s139 = sphi 0, %s137
    %s140 = sphi 0, %s139
    %s154 = sphi 0, %s140
    %s160 = sphi 0, %s162
    %s163 = sphi 0, %s160
    %s164 = sphi 0, %s163
    %s180 = sphi 0, %s164
    %s186 = sphi 0, %s188
    %s189 = sphi 0, %s186
    %s190 = sphi 0, %s189
    %s206 = sphi 0, %s190
    %s210 = sphi 0, %s210
    %s212 = sphi 0, %s210
    %s213 = sphi 0, %s212
    %s227 = sphi 0, %s213
  $region4: #{_decode_jit.1} parent=0 // loop_header_branch
    %27 = sbr.rel (%p25) target = $region8
  $region5: #{_decode_jit.1} parent=0 // loop_body
    %s29 = ssub.s32 %s24, 1
    %s30 = ssub.s32 %s24, 2
    %s31 = sadd.s32 %s24, 1
    %s33 = sadd.s32 %s32, 1
    %p36 = scmp.eq.s32.totalorder %s24, 7
    %p37 = scmp.ne.s32.totalorder %s32, %s34
    %p38 = scmp.eq.s32.totalorder %s24, 0
    %p39 = por %p37, %p38
    %p40 = scmp.ne.s32.totalorder %s32, %s34
    %p41 = scmp.eq.s32.totalorder %s29, 7
    %p42 = por %p40, %p41
    %p43 = scmp.ne.s32.totalorder %s34, %s35
    %p44 = scmp.eq.s32.totalorder %s29, 0
    %p45 = por %p43, %p44
    %p46 = scmp.ne.s32.totalorder %s34, %s35
    %p47 = scmp.eq.s32.totalorder %s30, 7
    %p48 = por %p46, %p47
    %p50 = scmp.ne.s32.totalorder %s35, %s49
    %p51 = scmp.eq.s32.totalorder %s30, 0
    %p52 = por %p50, %p51
    %s54 = sadd.s32 %s53, 1
    %p57 = scmp.eq.s32.totalorder %s24, 7
    %p58 = scmp.ne.s32.totalorder %s53, %s55
    %p59 = scmp.eq.s32.totalorder %s24, 0
    %p60 = por %p58, %p59
    %p61 = scmp.ne.s32.totalorder %s53, %s55
    %p62 = scmp.eq.s32.totalorder %s29, 7
    %p63 = por %p61, %p62
    %p64 = scmp.ne.s32.totalorder %s55, %s56
    %p65 = scmp.eq.s32.totalorder %s29, 0
    %p66 = por %p64, %p65
    %p67 = scmp.ne.s32.totalorder %s55, %s56
    %p68 = scmp.eq.s32.totalorder %s30, 7
    %p69 = por %p67, %p68
    %p71 = scmp.ne.s32.totalorder %s56, %s70
    %p72 = scmp.eq.s32.totalorder %s30, 0
    %p73 = por %p71, %p72
    %s75 = sadd.s32 %s74, 1
    %p78 = scmp.eq.s32.totalorder %s24, 7
    %p79 = scmp.ne.s32.totalorder %s74, %s76
    %p80 = scmp.eq.s32.totalorder %s24, 0
    %p81 = por %p79, %p80
    %p82 = scmp.ne.s32.totalorder %s74, %s76
    %p83 = scmp.eq.s32.totalorder %s29, 7
    %p84 = por %p82, %p83
    %p85 = scmp.ne.s32.totalorder %s76, %s77
    %p86 = scmp.eq.s32.totalorder %s29, 0
    %p87 = por %p85, %p86
    %p88 = scmp.ne.s32.totalorder %s76, %s77
    %p89 = scmp.eq.s32.totalorder %s30, 7
    %p90 = por %p88, %p89
    %p92 = scmp.ne.s32.totalorder %s77, %s91
    %p93 = scmp.eq.s32.totalorder %s30, 0
    %p94 = por %p92, %p93
    %s96 = sadd.s32 %s95, 1
    %p99 = scmp.eq.s32.totalorder %s24, 7
    %p100 = scmp.ne.s32.totalorder %s95, %s97
    %p101 = scmp.eq.s32.totalorder %s24, 0
    %p102 = por %p100, %p101
    %p103 = scmp.ne.s32.totalorder %s95, %s97
    %p104 = scmp.eq.s32.totalorder %s29, 7
    %p105 = por %p103, %p104
    %p106 = scmp.ne.s32.totalorder %s97, %s98
    %p107 = scmp.eq.s32.totalorder %s29, 0
    %p108 = por %p106, %p107
    %p109 = scmp.ne.s32.totalorder %s97, %s98
    %p110 = scmp.eq.s32.totalorder %s30, 7
    %p111 = por %p109, %p110
    %p113 = scmp.ne.s32.totalorder %s98, %s112
    %p114 = scmp.eq.s32.totalorder %s30, 0
    %p115 = por %p113, %p114
    %s117 = sadd.s32 %s116, 1
    %p120 = scmp.eq.s32.totalorder %s24, 7
    %p121 = scmp.ne.s32.totalorder %s116, %s118
    %p122 = scmp.eq.s32.totalorder %s24, 0
    %p123 = por %p121, %p122
    %p124 = scmp.ne.s32.totalorder %s116, %s118
    %p125 = scmp.eq.s32.totalorder %s29, 7
    %p126 = por %p124, %p125
    %p127 = scmp.ne.s32.totalorder %s118, %s119
    %p128 = scmp.eq.s32.totalorder %s29, 0
    %p129 = por %p127, %p128
    %p130 = scmp.ne.s32.totalorder %s118, %s119
    %p131 = scmp.eq.s32.totalorder %s30, 7
    %p132 = por %p130, %p131
    %p134 = scmp.ne.s32.totalorder %s119, %s133
    %p135 = scmp.eq.s32.totalorder %s30, 0
    %p136 = por %p134, %p135
    %s138 = sadd.s32 %s137, 1
    %p141 = scmp.eq.s32.totalorder %s24, 7
    %p142 = scmp.ne.s32.totalorder %s137, %s139
    %p143 = scmp.eq.s32.totalorder %s24, 0
    %p144 = por %p142, %p143
    %p145 = scmp.ne.s32.totalorder %s137, %s139
    %p146 = scmp.eq.s32.totalorder %s29, 7
    %p147 = por %p145, %p146
    %p148 = scmp.ne.s32.totalorder %s139, %s140
    %p149 = scmp.eq.s32.totalorder %s29, 0
    %p150 = por %p148, %p149
    %p151 = scmp.ne.s32.totalorder %s139, %s140
    %p152 = scmp.eq.s32.totalorder %s30, 7
    %p153 = por %p151, %p152
    %p155 = scmp.ne.s32.totalorder %s140, %s154
    %p156 = scmp.eq.s32.totalorder %s30, 0
    %p157 = por %p155, %p156
    %s158 = ssub.s32 %s24, %s31
    %p159 = scmp.eq.s32.totalorder %s158, 0
    %s161 = sadd.s32 %s160, 1
    %s162 = scalar_select %p159, %s160, %s161
    %p165 = pneg %p159
    %p166 = scmp.eq.s32.totalorder %s24, 7
    %p167 = por %p165, %p166
    %p168 = scmp.ne.s32.totalorder %s160, %s163
    %p169 = scmp.eq.s32.totalorder %s24, 0
    %p170 = por %p168, %p169
    %p171 = scmp.ne.s32.totalorder %s160, %s163
    %p172 = scmp.eq.s32.totalorder %s29, 7
    %p173 = por %p171, %p172
    %p174 = scmp.ne.s32.totalorder %s163, %s164
    %p175 = scmp.eq.s32.totalorder %s29, 0
    %p176 = por %p174, %p175
    %p177 = scmp.ne.s32.totalorder %s163, %s164
    %p178 = scmp.eq.s32.totalorder %s30, 7
    %p179 = por %p177, %p178
    %p181 = scmp.ne.s32.totalorder %s164, %s180
    %p182 = scmp.eq.s32.totalorder %s30, 0
    %p183 = por %p181, %p182
    %s184 = ssub.s32 %s24, %s31
    %p185 = scmp.eq.s32.totalorder %s184, 0
    %s187 = sadd.s32 %s186, 1
    %s188 = scalar_select %p185, %s186, %s187
    %p191 = pneg %p185
    %p192 = scmp.eq.s32.totalorder %s24, 7
    %p193 = por %p191, %p192
    %p194 = scmp.ne.s32.totalorder %s186, %s189
    %p195 = scmp.eq.s32.totalorder %s24, 0
    %p196 = por %p194, %p195
    %p197 = scmp.ne.s32.totalorder %s186, %s189
    %p198 = scmp.eq.s32.totalorder %s29, 7
    %p199 = por %p197, %p198
    %p200 = scmp.ne.s32.totalorder %s189, %s190
    %p201 = scmp.eq.s32.totalorder %s29, 0
    %p202 = por %p200, %p201
    %p203 = scmp.ne.s32.totalorder %s189, %s190
    %p204 = scmp.eq.s32.totalorder %s30, 7
    %p205 = por %p203, %p204
    %p207 = scmp.ne.s32.totalorder %s190, %s206
    %p208 = scmp.eq.s32.totalorder %s30, 0
    %p209 = por %p207, %p208
    %s211 = sadd.s32 %s210, 1
    %p214 = scmp.eq.s32.totalorder %s24, 7
    %p215 = scmp.ne.s32.totalorder %s210, %s212
    %p216 = scmp.eq.s32.totalorder %s24, 0
    %p217 = por %p215, %p216
    %p218 = scmp.ne.s32.totalorder %s210, %s212
    %p219 = scmp.eq.s32.totalorder %s29, 7
    %p220 = por %p218, %p219
    %p221 = scmp.ne.s32.totalorder %s212, %s213
    %p222 = scmp.eq.s32.totalorder %s29, 0
    %p223 = por %p221, %p222
    %p224 = scmp.ne.s32.totalorder %s212, %s213
    %p225 = scmp.eq.s32.totalorder %s30, 7
    %p226 = por %p224, %p225
    %p228 = scmp.ne.s32.totalorder %s213, %s227
    %p229 = scmp.eq.s32.totalorder %s30, 0
    %p230 = por %p228, %p229
    %p231 = scmp.le.s32.totalorder 1, %s24
    %p232 = scmp.lt.s32.totalorder %s24, 9
    %p233 = pnand %p231, %p232
    %p234 = pneg %p233
    // Predicated region
    $region9: #{_decode_jit.1} parent=5 // pred_check
      _
    $region10: #{_decode_jit.1} parent=5 // pred_check_branch
      %236 = sbr.rel (%p233) target = $region12
    $region11: #{_decode_jit.1} parent=5 // pred_region
      %s237 = ssub.s32 %s24, 1
      // Predicated region
      $region13: #{_decode_jit.1} parent=11 // pred_check
        %p238 = pneg %p45
      $region14: #{_decode_jit.1} parent=11 // pred_check_branch
        %240 = sbr.rel (%p238) target = $region16
      $region15: #{_decode_jit.1} parent=11 // pred_region
        _
      $region16: #{_decode_jit.1} parent=11 // pred_fallthru
        _
      // Predicated region
      $region17: #{_decode_jit.1} parent=11 // pred_check
        %p241 = pneg %p66
      $region18: #{_decode_jit.1} parent=11 // pred_check_branch
        %243 = sbr.rel (%p241) target = $region20
      $region19: #{_decode_jit.1} parent=11 // pred_region
        _
      $region20: #{_decode_jit.1} parent=11 // pred_fallthru
        _
      // Predicated region
      $region21: #{_decode_jit.1} parent=11 // pred_check
        %p244 = pneg %p87
      $region22: #{_decode_jit.1} parent=11 // pred_check_branch
        %246 = sbr.rel (%p244) target = $region24
      $region23: #{_decode_jit.1} parent=11 // pred_region
        _
      $region24: #{_decode_jit.1} parent=11 // pred_fallthru
        _
      // Predicated region
      $region25: #{_decode_jit.1} parent=11 // pred_check
        %p247 = pneg %p108
      $region26: #{_decode_jit.1} parent=11 // pred_check_branch
        %249 = sbr.rel (%p247) target = $region28
      $region27: #{_decode_jit.1} parent=11 // pred_region
        _
      $region28: #{_decode_jit.1} parent=11 // pred_fallthru
        _
      // Predicated region
      $region29: #{_decode_jit.1} parent=11 // pred_check
        %p250 = pneg %p129
      $region30: #{_decode_jit.1} parent=11 // pred_check_branch
        %252 = sbr.rel (%p250) target = $region32
      $region31: #{_decode_jit.1} parent=11 // pred_region
        _
      $region32: #{_decode_jit.1} parent=11 // pred_fallthru
        _
      // Predicated region
      $region33: #{_decode_jit.1} parent=11 // pred_check
        %p253 = pneg %p150
      $region34: #{_decode_jit.1} parent=11 // pred_check_branch
        %255 = sbr.rel (%p253) target = $region36
      $region35: #{_decode_jit.1} parent=11 // pred_region
        _
      $region36: #{_decode_jit.1} parent=11 // pred_fallthru
        _
    $region12: #{_decode_jit.1} parent=5 // pred_fallthru
      _
    %p256 = scmp.lt.s32.totalorder %s24, 8
    // Predicated region
    $region37: #{_decode_jit.1} parent=5 // pred_check
      %p257 = pneg %p256
    $region38: #{_decode_jit.1} parent=5 // pred_check_branch
      %259 = sbr.rel (%p257) target = $region40
    $region39: #{_decode_jit.1} parent=5 // pred_region
      // Predicated region
      $region41: #{_decode_jit.1} parent=39 // pred_check
        %p260 = pneg %p170
      $region42: #{_decode_jit.1} parent=39 // pred_check_branch
        %262 = sbr.rel (%p260) target = $region44
      $region43: #{_decode_jit.1} parent=39 // pred_region
        %p263 = scmp.lt.s32.totalorder %s24, 7
        %s264 = scalar_select %p263, %s24, 7
        %s265 = smul.addr %s264, 8
        %s266 = scalar_lea.vmem %s7, %s265
      $region44: #{_decode_jit.1} parent=39 // pred_fallthru
        _
    $region40: #{_decode_jit.1} parent=5 // pred_fallthru
      _
    %p267 = scmp.le.s32.totalorder 1, %s24
    %p268 = scmp.lt.s32.totalorder %s24, 9
    %p269 = pnand %p267, %p268
    %p270 = pneg %p269
    // Predicated region
    $region45: #{_decode_jit.1} parent=5 // pred_check
      _
    $region46: #{_decode_jit.1} parent=5 // pred_check_branch
      %272 = sbr.rel (%p269) target = $region48
    $region47: #{_decode_jit.1} parent=5 // pred_region
      %s273 = ssub.s32 %s24, 1
      %p274 = pneg %p45
      %p275 = pneg %p42
      %p276 = pneg %p66
      %p277 = pneg %p63
      %p278 = pneg %p87
      %p279 = pneg %p84
      %p280 = pneg %p108
      %p281 = pneg %p105
      %p282 = pneg %p129
      %p283 = pneg %p126
      %p284 = pneg %p150
      %p285 = pneg %p147
      %p286 = scmp.lt.s32.totalorder %s29, 7
      %s287 = scalar_select %p286, %s29, 7
      %s288 = smul.addr %s287, 8
      %s289 = scalar_lea.vmem %s7, %s288
      %p290 = pneg %p176
      %p291 = pneg %p173
      %p292 = pneg %p202
      %p293 = pneg %p199
      %p294 = scmp.lt.s32.totalorder %s29, 7
      %s295 = scalar_select %p294, %s29, 7
      %s296 = smul.addr %s295, 8
      %s297 = scalar_lea.vmem %s8, %s296
      %p298 = pneg %p223
      %p299 = pneg %p220
      %p300 = scmp.lt.s32.totalorder %s29, 7
      %s301 = scalar_select %p300, %s29, 7
      %s302 = smul.addr %s301, 8
      %s303 = scalar_lea.vmem %s7, %s302
      %p304 = scmp.lt.s32.totalorder %s29, 7
      %s305 = scalar_select %p304, %s29, 7
      %s306 = smul.addr %s305, 8
      %s307 = scalar_lea.vmem %s8, %s306
      %v308 = vlaneseq
      %v309 = vand.u32 %v308, 127
      %p310 = scmp.eq.s32.totalorder %s29, 0
      // Predicated region
      $region49: #{_decode_jit.1} parent=47 // pred_check
        %p311 = pneg %p310
      $region50: #{_decode_jit.1} parent=47 // pred_check_branch
        %313 = sbr.rel (%p311) target = $region52
      $region51: #{_decode_jit.1} parent=47 // pred_region
        %vm314 = vcmp.eq.s32.totalorder %v309, 2
        %v315 = vsel %vm314, 1, 0
        %v316 = vcvt.s32.f32 %v315
        %317 = vst [vmem:[#allocation2] sm:$0xff] %v316
        %v318 = vld [vmem:[%s6] sm:$0xff]
        %vm319 = vcmask 261120
        %320 = vst.msk [vmem:[%s9] sm:$0xff] %vm319, %v318
      $region52: #{_decode_jit.1} parent=47 // pred_fallthru
        _
      %v321 = vld [vmem:[#allocation2] sm:$0xff]
      %v322 = vld [vmem:[%s9] sm:$0xff]
      %v323 = vld [vmem:[%s1] sm:$0xff]
      %v324 = vld [vmem:[%s1 + $0x8] sm:$0xff]
      %v325 = vld [vmem:[%s1 + $0x10] sm:$0xff]
      %v326 = vld [vmem:[%s1 + $0x18] sm:$0xff]
      %v327 = vld [vmem:[%s1 + $0x20] sm:$0xff]
      %v328 = vld [vmem:[%s1 + $0x28] sm:$0xff]
      %v329 = vld [vmem:[%s1 + $0x30] sm:$0xff]
      %v330 = vld [vmem:[%s1 + $0x38] sm:$0xff]
      %v331 = vld [vmem:[%s1 + $0x40] sm:$0xff]
      %v332 = vld [vmem:[%s1 + $0x48] sm:$0xff]
      %v333 = vld [vmem:[%s1 + $0x50] sm:$0xff]
      %v334 = vld [vmem:[%s1 + $0x58] sm:$0xff]
      %v335 = vld [vmem:[%s1 + $0x60] sm:$0xff]
      %v336 = vld [vmem:[%s1 + $0x68] sm:$0xff]
      %v337 = vld [vmem:[%s1 + $0x70] sm:$0xff]
      %v338 = vld [vmem:[%s1 + $0x78] sm:$0xff]
      %s339 = scalar_lea.vmem %s1, 128
      %v340 = vld [vmem:[%s339] sm:$0xff]
      %v341 = vld [vmem:[%s339 + $0x8] sm:$0xff]
      %v342 = vld [vmem:[%s339 + $0x10] sm:$0xff]
      %v343 = vld [vmem:[%s339 + $0x18] sm:$0xff]
      %v344 = vld [vmem:[%s339 + $0x20] sm:$0xff]
      %v345 = vld [vmem:[%s339 + $0x28] sm:$0xff]
      %v346 = vld [vmem:[%s339 + $0x30] sm:$0xff]
      %v347 = vld [vmem:[%s339 + $0x38] sm:$0xff]
      %v348 = vld [vmem:[%s339 + $0x40] sm:$0xff]
      %v349 = vld [vmem:[%s339 + $0x48] sm:$0xff]
      %v350 = vld [vmem:[%s339 + $0x50] sm:$0xff]
      %v351 = vld [vmem:[%s339 + $0x58] sm:$0xff]
      %v352 = vld [vmem:[%s339 + $0x60] sm:$0xff]
      %v353 = vld [vmem:[%s339 + $0x68] sm:$0xff]
      %v354 = vld [vmem:[%s339 + $0x70] sm:$0xff]
      %v355 = vld [vmem:[%s339 + $0x78] sm:$0xff]
      %s356 = scalar_lea.vmem %s1, 256
      %v357 = vld [vmem:[%s356] sm:$0xff]
      %v358 = vld [vmem:[%s356 + $0x8] sm:$0xff]
      %v359 = vld [vmem:[%s356 + $0x10] sm:$0xff]
      %v360 = vld [vmem:[%s356 + $0x18] sm:$0xff]
      %v361 = vld [vmem:[%s356 + $0x20] sm:$0xff]
      %v362 = vld [vmem:[%s356 + $0x28] sm:$0xff]
      %v363 = vld [vmem:[%s356 + $0x30] sm:$0xff]
      %v364 = vld [vmem:[%s356 + $0x38] sm:$0xff]
      %v365 = vld [vmem:[%s356 + $0x40] sm:$0xff]
      %v366 = vld [vmem:[%s356 + $0x48] sm:$0xff]
      %v367 = vld [vmem:[%s356 + $0x50] sm:$0xff]
      %v368 = vld [vmem:[%s356 + $0x58] sm:$0xff]
      %v369 = vld [vmem:[%s356 + $0x60] sm:$0xff]
      %v370 = vld [vmem:[%s356 + $0x68] sm:$0xff]
      %v371 = vld [vmem:[%s356 + $0x70] sm:$0xff]
      %v372 = vld [vmem:[%s356 + $0x78] sm:$0xff]
      %v373 = vld [vmem:[%s2] sm:$0xff]
      %v374 = vld [vmem:[%s2 + $0x8] sm:$0xff]
      %v375 = vld [vmem:[%s2 + $0x10] sm:$0xff]
      %v376 = vld [vmem:[%s2 + $0x18] sm:$0xff]
      %vm377 = vcmask 261120
      %v379 = vsel %vm377, %v322, 0
      %381 = vmatpush.msra.mxu0 0.0
      %382 = vmatpush.msra.mxu0 0.0
      %383 = vmatpush.msra.mxu0 0.0
      %384 = vmatpush.msra.mxu0 0.0
      %385 = vmatpush.msra.mxu0 0.0
      %386 = vmatpush.msra.mxu0 0.0
      %387 = vmatpush.msra.mxu0 0.0
      %388 = vmatpush.msra.mxu0 0.0
      %389 = vmatpush.msra.mxu0 0.0
      %390 = vmatpush.msra.mxu0 0.0
      %391 = vmatpush.msra.mxu0 0.0
      %392 = vmatpush.msra.mxu0 0.0
      %393 = vmatpush.msra.mxu0 %v376
      %394 = vmatpush.msra.mxu0 %v375
      %395 = vmatpush.msra.mxu0 %v374
      %396 = vmatpush.msra.mxu0 %v373
      %397 = vmatmul.f32.gmra.mxu0 %v379
      %v398 = vpop.f32.mrf.mxu0
      %v399 = vadd.f32 0.0, %v398
      %400 = vdwg.mxu0
      %s401 = scalar_lea.vmem %s2, 32
      %v402 = vld [vmem:[%s401] sm:$0xff]
      %v403 = vld [vmem:[%s401 + $0x8] sm:$0xff]
      %v404 = vld [vmem:[%s401 + $0x10] sm:$0xff]
      %v405 = vld [vmem:[%s401 + $0x18] sm:$0xff]
      %406 = vmatpush.msra.mxu0 0.0
      %407 = vmatpush.msra.mxu0 0.0
      %408 = vmatpush.msra.mxu0 0.0
      %409 = vmatpush.msra.mxu0 0.0
      %410 = vmatpush.msra.mxu0 0.0
      %411 = vmatpush.msra.mxu0 0.0
      %412 = vmatpush.msra.mxu0 0.0
      %413 = vmatpush.msra.mxu0 0.0
      %414 = vmatpush.msra.mxu0 0.0
      %415 = vmatpush.msra.mxu0 0.0
      %416 = vmatpush.msra.mxu0 0.0
      %417 = vmatpush.msra.mxu0 0.0
      %418 = vmatpush.msra.mxu0 %v405
      %419 = vmatpush.msra.mxu0 %v404
      %420 = vmatpush.msra.mxu0 %v403
      %421 = vmatpush.msra.mxu0 %v402
      %422 = vmatmul.f32.gmra.mxu0 %v379
      %v423 = vpop.f32.mrf.mxu0
      %v424 = vadd.f32 0.0, %v423
      %425 = vdwg.mxu0
      %s426 = scalar_lea.vmem %s2, 64
      %v427 = vld [vmem:[%s426] sm:$0xff]
      %v428 = vld [vmem:[%s426 + $0x8] sm:$0xff]
      %v429 = vld [vmem:[%s426 + $0x10] sm:$0xff]
      %v430 = vld [vmem:[%s426 + $0x18] sm:$0xff]
      %v431 = vld [vmem:[%s3] sm:$0x1]
      %v433 = vperm.slane %v431, 0
      %435 = vmatpush.msra.mxu0 0.0
      %436 = vmatpush.msra.mxu0 0.0
      %437 = vmatpush.msra.mxu0 0.0
      %438 = vmatpush.msra.mxu0 0.0
      %439 = vmatpush.msra.mxu0 0.0
      %440 = vmatpush.msra.mxu0 0.0
      %441 = vmatpush.msra.mxu0 0.0
      %442 = vmatpush.msra.mxu0 0.0
      %443 = vmatpush.msra.mxu0 0.0
      %444 = vmatpush.msra.mxu0 0.0
      %445 = vmatpush.msra.mxu0 0.0
      %446 = vmatpush.msra.mxu0 0.0
      %447 = vmatpush.msra.mxu0 %v430
      %448 = vmatpush.msra.mxu0 %v429
      %449 = vmatpush.msra.mxu0 %v428
      %450 = vmatpush.msra.mxu0 %v427
      %451 = vmatmul.f32.gmra.mxu0 %v379
      %v452 = vpop.f32.mrf.mxu0
      %v453 = vadd.f32 %v433, %v452
      %454 = vdwg.mxu0
      %455 = vmatpush.msra.mxu0 %v338
      %456 = vmatpush.msra.mxu0 %v337
      %457 = vmatpush.msra.mxu0 %v336
      %458 = vmatpush.msra.mxu0 %v335
      %459 = vmatpush.msra.mxu0 %v334
      %460 = vmatpush.msra.mxu0 %v333
      %461 = vmatpush.msra.mxu0 %v332
      %462 = vmatpush.msra.mxu0 %v331
      %463 = vmatpush.msra.mxu0 %v330
      %464 = vmatpush.msra.mxu0 %v329
      %465 = vmatpush.msra.mxu0 %v328
      %466 = vmatpush.msra.mxu0 %v327
      %467 = vmatpush.msra.mxu0 %v326
      %468 = vmatpush.msra.mxu0 %v325
      %469 = vmatpush.msra.mxu0 %v324
      %470 = vmatpush.msra.mxu0 %v323
      %471 = vmatmul.f32.gmra.mxu0 %v321
      %v472 = vpop.f32.mrf.mxu0
      %v473 = vadd.f32 %v399, %v472
      %474 = vdwg.mxu0
      %v475 = vxor.u32 %v473, 2147483648
      %v476 = vmul.f32 %v475, 1.442695
      %v477 = vpow.pop %v476
      %v478 = vadd.f32 %v477, 1.0
      %v479 = vrcp.pop %v478
      %v480 = vmul.f32 %v478, %v479
      %v481 = vsub.f32 1.0, %v480
      %v482 = vmul.f32 %v479, %v481
      %v483 = vadd.f32 %v479, %v482
      %vm484 = vweird.f32 %v478
      %vm485 = vweird.f32 %v479
      %vm486 = vmor %vm484, %vm485
      %v487 = vsel %vm486, %v479, %v483
      %v488 = vand.u32 2147483647, %v478
      %vm489 = vcmp.eq.f32.partialorder %v488, 8.507059e+37
      %v490 = vand.u32 %v478, 2147483648
      %v491 = vor.u32 1.1754944e-38, %v490
      %v492 = vsel %vm489, %v491, %v487
      %v493 = vmul.f32 1.0, %v492
      %494 = vmatpush.msra.mxu0 %v355
      %495 = vmatpush.msra.mxu0 %v354
      %496 = vmatpush.msra.mxu0 %v353
      %497 = vmatpush.msra.mxu0 %v352
      %498 = vmatpush.msra.mxu0 %v351
      %499 = vmatpush.msra.mxu0 %v350
      %500 = vmatpush.msra.mxu0 %v349
      %501 = vmatpush.msra.mxu0 %v348
      %502 = vmatpush.msra.mxu0 %v347
      %503 = vmatpush.msra.mxu0 %v346
      %504 = vmatpush.msra.mxu0 %v345
      %505 = vmatpush.msra.mxu0 %v344
      %506 = vmatpush.msra.mxu0 %v343
      %507 = vmatpush.msra.mxu0 %v342
      %508 = vmatpush.msra.mxu0 %v341
      %509 = vmatpush.msra.mxu0 %v340
      %510 = vmatmul.f32.gmra.mxu0 %v321
      %v511 = vpop.f32.mrf.mxu0
      %v512 = vadd.f32 %v424, %v511
      %513 = vdwg.mxu0
      %v514 = vxor.u32 %v512, 2147483648
      %v515 = vmul.f32 %v514, 1.442695
      %v516 = vpow.pop %v515
      %v517 = vadd.f32 %v516, 1.0
      %v518 = vrcp.pop %v517
      %v519 = vmul.f32 %v517, %v518
      %v520 = vsub.f32 1.0, %v519
      %v521 = vmul.f32 %v518, %v520
      %v522 = vadd.f32 %v518, %v521
      %vm523 = vweird.f32 %v517
      %vm524 = vweird.f32 %v518
      %vm525 = vmor %vm523, %vm524
      %v526 = vsel %vm525, %v518, %v522
      %v527 = vand.u32 2147483647, %v517
      %vm528 = vcmp.eq.f32.partialorder %v527, 8.507059e+37
      %v529 = vand.u32 %v517, 2147483648
      %v530 = vor.u32 1.1754944e-38, %v529
      %v531 = vsel %vm528, %v530, %v526
      %v532 = vmul.f32 1.0, %v531
      %v533 = vmul.f32 %v493, %v453
      %534 = vmatpush.msra.mxu0 %v372
      %535 = vmatpush.msra.mxu0 %v371
      %536 = vmatpush.msra.mxu0 %v370
      %537 = vmatpush.msra.mxu0 %v369
      %538 = vmatpush.msra.mxu0 %v368
      %539 = vmatpush.msra.mxu0 %v367
      %540 = vmatpush.msra.mxu0 %v366
      %541 = vmatpush.msra.mxu0 %v365
      %542 = vmatpush.msra.mxu0 %v364
      %543 = vmatpush.msra.mxu0 %v363
      %544 = vmatpush.msra.mxu0 %v362
      %545 = vmatpush.msra.mxu0 %v361
      %546 = vmatpush.msra.mxu0 %v360
      %547 = vmatpush.msra.mxu0 %v359
      %548 = vmatpush.msra.mxu0 %v358
      %549 = vmatpush.msra.mxu0 %v357
      %550 = vmatmul.f32.gmra.mxu0 %v321
      %v551 = vpop.f32.mrf.mxu0
      %v552 = vadd.f32 %v533, %v551
      %553 = vdwg.mxu0
      %v554 = vtanh.pop %v552
      %v555 = vsub.f32 1.0, %v532
      %v556 = vmul.f32 %v555, %v554
      %v557 = vmul.f32 %v532, %v322
      %v558 = vadd.f32 %v556, %v557
      %v559 = vld [vmem:[%s4] sm:$0xff]
      %v560 = vld [vmem:[%s4 + $0x8] sm:$0xff]
      %v561 = vld [vmem:[%s4 + $0x10] sm:$0xff]
      %v562 = vld [vmem:[%s4 + $0x18] sm:$0xff]
      %v563 = vld [vmem:[%s5] sm:$0x1]
      %v565 = vperm.slane %v563, 0
      %v568 = vsel %vm377, %v558, 0
      %570 = vmatpush.msra.mxu0 0.0
      %571 = vmatpush.msra.mxu0 0.0
      %572 = vmatpush.msra.mxu0 0.0
      %573 = vmatpush.msra.mxu0 0.0
      %574 = vmatpush.msra.mxu0 0.0
      %575 = vmatpush.msra.mxu0 0.0
      %576 = vmatpush.msra.mxu0 0.0
      %577 = vmatpush.msra.mxu0 0.0
      %578 = vmatpush.msra.mxu0 0.0
      %579 = vmatpush.msra.mxu0 0.0
      %580 = vmatpush.msra.mxu0 0.0
      %581 = vmatpush.msra.mxu0 0.0
      %582 = vmatpush.msra.mxu0 %v562
      %583 = vmatpush.msra.mxu0 %v561
      %584 = vmatpush.msra.mxu0 %v560
      %585 = vmatpush.msra.mxu0 %v559
      %586 = vmatmul.f32.gmra.mxu0 %v568
      %v587 = vpop.f32.mrf.mxu0
      %v588 = vadd.f32 %v565, %v587
      %589 = vdwg.mxu0
      %590 = vmax.xlane.f32.xlu0 %v588
      %v591 = vpop.xlane.xlu0 %590
      %v592 = vsub.f32 %v588, %v591
      %v593 = vmul.f32 %v592, 1.442695
      %v594 = vpow.pop %v593
      %595 = vadd.xlane.f32.xlu0 %v594
      %v596 = vpop.xlane.xlu0 %595
      %v597 = vlog2.pop %v596
      %v598 = vmul.f32 %v597, 0.6931472
      %v599 = vsub.f32 %v592, %v598
      %600 = vst [vmem:[%s307] sm:$0xff] %v599
      %601 = vst.msk [vmem:[%s9] sm:$0xff] %vm377, %v558
      %vm602 = vcmp.eq.f32.partialorder %v588, %v591
      %v603 = vsel %vm602, %v309, 128
      %v604 = vand.u32 %v603, 65535
      %v605 = vshra.s32 %v603, 16
      %v606 = vcvt.s32.f32 %v604
      %v607 = vcvt.s32.f32 %v605
      %608 = vmin.xlane.f32.xlu0 %v607
      %v609 = vpop.xlane.xlu0 %608
      %vm610 = vcmp.eq.f32.partialorder %v607, %v609
      %v611 = vsel %vm610, %v606, inf
      %612 = vmin.xlane.f32.xlu0 %v611
      %v613 = vpop.xlane.xlu0 %612
      %v614 = vcvt.f32.s32 %v613
      %v615 = vcvt.f32.s32 %v609
      %v616 = vshll.u32 %v615, 16
      %v617 = vadd.s32 %v616, %v614
      %vm618 = vcmp.eq.s32.totalorder %v309, %v617
      %v619 = vsel %vm618, 1, 0
      %v620 = vcvt.s32.f32 %v619
      %s621 = sld [smem:[#allocation4 + %s29]]
      %p622 = scmp.gt.s32.totalorder %s621, 0
      %s623 = scalar_select %p622, 1, 0
      %s624 = scvt.s32.f32 %s623
      %v625 = vld [vmem:[%s303] sm:$0xff]
      %v626 = vstv %s624
      %v627 = vmul.f32 %v626, %v625
      %s628 = ssub.f32 1.0, %s624
      %v629 = vstv %s628
      %v630 = vmul.f32 %v629, %v620
      %v631 = vadd.f32 %v627, %v630
      %632 = vst [vmem:[#allocation2] sm:$0xff] %v631
      %p633 = scmp.lt.s32.totalorder %s29, 7
      %s634 = scalar_select %p633, %s29, 7
      %s635 = smul.addr %s634, 8
      %s636 = scalar_lea.vmem %s8, %s635
      // Predicated region
      $region53: #{_decode_jit.1} parent=47 // pred_check
        %p637 = pneg %p199
      $region54: #{_decode_jit.1} parent=47 // pred_check_branch
        %639 = sbr.rel (%p637) target = $region56
      $region55: #{_decode_jit.1} parent=47 // pred_region
        _
      $region56: #{_decode_jit.1} parent=47 // pred_fallthru
        _
      // Predicated region
      $region57: #{_decode_jit.1} parent=47 // pred_check
        %p640 = pneg %p220
      $region58: #{_decode_jit.1} parent=47 // pred_check_branch
        %642 = sbr.rel (%p640) target = $region60
      $region59: #{_decode_jit.1} parent=47 // pred_region
        _
      $region60: #{_decode_jit.1} parent=47 // pred_fallthru
        _
      // Predicated region
      $region61: #{_decode_jit.1} parent=47 // pred_check
        %p643 = pneg %p220
      $region62: #{_decode_jit.1} parent=47 // pred_check_branch
        %645 = sbr.rel (%p643) target = $region64
      $region63: #{_decode_jit.1} parent=47 // pred_region
        _
      $region64: #{_decode_jit.1} parent=47 // pred_fallthru
        _
    $region48: #{_decode_jit.1} parent=5 // pred_fallthru
      _
    %p646 = scmp.le.s32.totalorder 2, %s24
    // Predicated region
    $region65: #{_decode_jit.1} parent=5 // pred_check
      %p647 = pneg %p646
    $region66: #{_decode_jit.1} parent=5 // pred_check_branch
      %649 = sbr.rel (%p647) target = $region68
    $region67: #{_decode_jit.1} parent=5 // pred_region
      %s650 = ssub.s32 %s24, 2
      // Predicated region
      $region69: #{_decode_jit.1} parent=67 // pred_check
        %p651 = pneg %p205
      $region70: #{_decode_jit.1} parent=67 // pred_check_branch
        %653 = sbr.rel (%p651) target = $region72
      $region71: #{_decode_jit.1} parent=67 // pred_region
        %p654 = scmp.lt.s32.totalorder %s30, 7
        %s655 = scalar_select %p654, %s30, 7
        %s656 = smul.addr %s655, 8
        %s657 = scalar_lea.vmem %s8, %s656
      $region72: #{_decode_jit.1} parent=67 // pred_fallthru
        _
    $region68: #{_decode_jit.1} parent=5 // pred_fallthru
      _
  $region6: #{_decode_jit.1} parent=0 // loop_footer
    %s28 = sadd.s32 1, %s24
  $region7: #{_decode_jit.1} parent=0 // loop_footer_branch
    %23 = sbr.rel target = $region3
  $region8: #{_decode_jit.1} parent=0 // loop_exit
    _

</llo_original>
